<compile_context>
chip_gen: v5e
topology: v5e:2x2
jax: 0.10.0
libtpu: 0.0.40
codegen_flags: <defaults>
</compile_context>

<pallas_src>
from functools import partial

import numpy as np
import jax
import jax.numpy as jnp
from jax.experimental import pallas as pl
from jax.experimental.pallas import tpu as pltpu


def _round_up(x, m):
    return (x + m - 1) // m * m


def _pick_batch_block(n, lanes_per_image, target_lanes=2048):
    """Largest useful divisor of n, keeping grid >= 2 (2 TCs on v7x) and ~target lanes/step."""
    cap = max(1, n // 2) if n >= 2 else 1
    best = 1
    for d in range(1, cap + 1):
        if n % d == 0:
            best = d
            if d * lanes_per_image >= target_lanes:
                break
    return best


def _conv_kernel(x_ref, w_ref, b_ref, o_ref, *, kh, kw, wp, n_lanes, b_blk):
    """One batch block per grid step.

    x_ref: (b_blk, Cin_p, L)        flattened reflection-padded images (zero tail), bf16
    w_ref: (kh*kw, Cout_p, Cin_p)   per-tap weights, bf16
    b_ref: (Cout_p, 1)              bias, f32
    o_ref: (b_blk, Cout_p, n_lanes) flat, lane-dense output
    """
    bias = b_ref[...].astype(jnp.float32)                      # (Cout_p, 1)
    for b in range(b_blk):
        acc = None
        for i in range(kh):
            for j in range(kw):
                off = i * wp + j                                # static lane offset for tap (i, j)
                xs = x_ref[b, :, pl.ds(off, n_lanes)]           # (Cin_p, n_lanes) direct sliced load
                w_tap = w_ref[i * kw + j]                       # (Cout_p, Cin_p)
                p = jnp.dot(w_tap, xs, preferred_element_type=jnp.float32)
                acc = p if acc is None else acc + p             # f32 accumulation
        o_ref[b] = (acc + bias).astype(o_ref.dtype)             # lane-dense unmasked store


def conv_layer_forward(x_nchw, weight_oihw, bias, stride, *, compute_dtype=jnp.bfloat16):
    """ConvLayer.forward: ReflectionPad2d(k // 2) -> Conv2d(Cin, Cout, k, stride).

    x_nchw:      (N, Cin, H, W)
    weight_oihw: (Cout, Cin, KH, KW)   (PyTorch Conv2d weight layout)
    bias:        (Cout,)
    returns:     (N, Cout, Ho, Wo)     in x_nchw.dtype
    """
    n, cin, h, w = x_nchw.shape
    cout, cin_w, kh, kw = weight_oihw.shape
    assert cin_w == cin, "weight Cin mismatch"
    assert kh == kw, "ConvLayer uses a square kernel"
    assert kh % 2 == 1, "odd kernel size required (ReflectionPad2d + k//2 semantics)"
    pad = kh // 2
    assert pad < h and pad < w, "ReflectionPad2d requires pad < spatial size"

    itemsize = np.dtype(compute_dtype).itemsize
    out_itemsize = np.dtype(x_nchw.dtype).itemsize
    sub = 8 if itemsize == 4 else 16
    cin_p = _round_up(cin, sub)                      # aligned sublane tiles for the tap loads
    cout_p = _round_up(cout, 8)                      # aligned output sublanes

    # Reflection pad directly in NCHW (no layout transpose), then flatten spatial row-major.
    xp = jnp.pad(x_nchw, ((0, 0), (0, 0), (pad, pad), (pad, pad)), mode="reflect")
    hp, wp = h + 2 * pad, w + 2 * pad
    ho1, wo1 = hp - kh + 1, wp - kw + 1              # stride-1 output size

    n_lanes = _round_up(ho1 * wp, 128)               # lane-dense flat output width
    max_off = (kh - 1) * wp + (kw - 1)               # largest tap lane offset
    l_flat = _round_up(max_off + n_lanes, 128)       # flat input length
    assert l_flat >= hp * wp and l_flat >= n_lanes + max_off  # every tap slice stays in bounds

    xp = jnp.pad(xp, ((0, 0), (0, cin_p - cin), (0, 0), (0, 0)))          # zero-pad channels
    x_flat = xp.reshape(n, cin_p, hp * wp)
    x_flat = jnp.pad(x_flat, ((0, 0), (0, 0), (0, l_flat - hp * wp)))
    x_flat = x_flat.astype(compute_dtype)

    # (Cout, Cin, KH, KW) -> pad -> (KH, KW, Cout_p, Cin_p) -> (KH*KW, Cout_p, Cin_p).
    w_p = jnp.pad(weight_oihw, ((0, cout_p - cout), (0, cin_p - cin), (0, 0), (0, 0)))
    w_taps = jnp.transpose(w_p, (2, 3, 0, 1)).reshape(kh * kw, cout_p, cin_p).astype(compute_dtype)
    b_p = jnp.pad(bias, (0, cout_p - cout)).reshape(cout_p, 1).astype(jnp.float32)

    b_blk = _pick_batch_block(n, ho1 * wp)
    grid = (n // b_blk,)

    # Scoped-VMEM limit sized to the actual (double-buffered) per-step blocks, <= 64 MiB (v7x-safe).
    in_block = b_blk * cin_p * l_flat * itemsize
    out_block = b_blk * cout_p * n_lanes * out_itemsize
    w_bytes = kh * kw * cout_p * cin_p * itemsize + cout_p * 4
    need = 2 * (in_block + out_block + w_bytes)
    vmem_limit = int(min(max(4 * need + (1 << 20), 16 << 20), 64 << 20))

    cost = pl.CostEstimate(
        flops=2 * n * cout_p * (kh * kw * cin_p) * n_lanes,
        transcendentals=0,
        bytes_accessed=itemsize * (n * cin_p * l_flat + kh * kw * cout_p * cin_p)
        + 4 * cout_p + out_itemsize * n * cout_p * n_lanes,
    )

    out_flat = pl.pallas_call(
        partial(_conv_kernel, kh=kh, kw=kw, wp=wp, n_lanes=n_lanes, b_blk=b_blk),
        out_shape=jax.ShapeDtypeStruct((n, cout_p, n_lanes), x_nchw.dtype),
        grid=grid,
        in_specs=[
            pl.BlockSpec((b_blk, cin_p, l_flat), lambda b: (b, 0, 0)),
            pl.BlockSpec((kh * kw, cout_p, cin_p), lambda b: (0, 0, 0)),
            pl.BlockSpec((cout_p, 1), lambda b: (0, 0)),
        ],
        out_specs=pl.BlockSpec((b_blk, cout_p, n_lanes), lambda b: (b, 0, 0)),
        compiler_params=pltpu.CompilerParams(
            dimension_semantics=("parallel",),
            vmem_limit_bytes=vmem_limit,
        ),
        cost_estimate=cost,
    )(x_flat, w_taps, b_p)

    # Drop padded channels and the Wp-periodic garbage columns; output is already NCHW-major.
    out = out_flat[:, :cout, :ho1 * wp].reshape(n, cout, ho1, wp)[:, :, :, :wo1]
    if stride > 1:
        # TODO(synk): dense stride-1 compute + subsample (stride^2 extra work); see header note.
        out = out[:, :, ::stride, ::stride]
    return out


def _reference_forward(x_nchw, weight_oihw, bias, stride):
    """Pure-JAX reference (lax conv) for correctness checking."""
    k = weight_oihw.shape[2]
    pad = k // 2
    xp = jnp.pad(x_nchw, ((0, 0), (0, 0), (pad, pad), (pad, pad)), mode="reflect")
    out = jax.lax.conv_general_dilated(
        xp, weight_oihw, window_strides=(stride, stride), padding="VALID",
        dimension_numbers=("NCHW", "OIHW", "NCHW"))
    return out + bias.reshape(1, -1, 1, 1)


if __name__ == "__main__":
    # Small shapes consistent with the module: batch=2, in_channels=4, out_channels=8,
    # spatial=16x16, kernel_size=3, stride=1.
    key = jax.random.PRNGKey(0)
    k_x, k_w, k_b = jax.random.split(key, 3)

    N, C_IN, H, W = 2, 4, 16, 16
    C_OUT, K, STRIDE = 8, 3, 1

    x = jax.random.normal(k_x, (N, C_IN, H, W), dtype=jnp.float32)
    weight = jax.random.normal(k_w, (C_OUT, C_IN, K, K), dtype=jnp.float32) * 0.1
    bias = jax.random.normal(k_b, (C_OUT,), dtype=jnp.float32) * 0.1

    out = conv_layer_forward(x, weight, bias, STRIDE)
    out = jax.block_until_ready(out)

    ref = jax.block_until_ready(_reference_forward(x, weight, bias, STRIDE))
    assert out.shape == ref.shape, (out.shape, ref.shape)
    # bf16 inputs/weights with f32 accumulation: loose tolerance vs the f32 lax reference.
    assert jnp.allclose(out, ref, atol=3e-2, rtol=3e-2), "mismatch vs reference conv"

    print("KERNEL_OK")
</pallas_src>

<mosaic_0001>
module attributes {stable_mosaic.version = 11 : i64} {
  func.func @_conv_kernel(%arg0: i32, %arg1: memref<1x16x512xbf16, #tpu.memory_space<vmem>>, %arg2: memref<9x8x16xbf16, #tpu.memory_space<vmem>>, %arg3: memref<8x1xf32, #tpu.memory_space<vmem>>, %arg4: memref<1x8x384xf32, #tpu.memory_space<vmem>>) attributes {dimension_semantics = [#tpu.dimension_semantics<parallel>], iteration_bounds = array<i64: 2>, scalar_prefetch = 0 : i64, scratch_operands = 0 : i64, tpu.core_type = #tpu.core_type<tc>, window_params = [{transform_indices = @transform_0, window_bounds = array<i64: 1, 16, 512>}, {pipeline_mode = #tpu.pipeline_mode<synchronous>, transform_indices = @transform_1, window_bounds = array<i64: 9, 8, 16>}, {pipeline_mode = #tpu.pipeline_mode<synchronous>, transform_indices = @transform_2, window_bounds = array<i64: 8, 1>}, {transform_indices = @transform_3, window_bounds = array<i64: 1, 8, 384>}]} {
    %c0 = arith.constant 0 : index
    %c0_0 = arith.constant 0 : index
    %0 = vector.load %arg3[%c0, %c0_0] : memref<8x1xf32, #tpu.memory_space<vmem>>, vector<8x1xf32>
    %c0_1 = arith.constant 0 : index
    %c0_2 = arith.constant 0 : index
    %c0_3 = arith.constant 0 : index
    %1 = vector.load %arg1[%c0_1, %c0_2, %c0_3] : memref<1x16x512xbf16, #tpu.memory_space<vmem>>, vector<1x16x384xbf16>
    %2 = vector.shape_cast %1 : vector<1x16x384xbf16> to vector<16x384xbf16>
    %c0_4 = arith.constant 0 : index
    %c0_5 = arith.constant 0 : index
    %c0_6 = arith.constant 0 : index
    %3 = vector.load %arg2[%c0_4, %c0_5, %c0_6] : memref<9x8x16xbf16, #tpu.memory_space<vmem>>, vector<1x8x16xbf16>
    %4 = vector.shape_cast %3 : vector<1x8x16xbf16> to vector<8x16xbf16>
    %cst = arith.constant dense<0.000000e+00> : vector<8x384xf32>
    %5 = tpu.matmul %4, %2, %cst {dimension_numbers = #tpu.dot_dimension_numbers<[1], [0], [0], [1], [0, 0, 1, 1], [], []>} : vector<8x16xbf16>, vector<16x384xbf16>, vector<8x384xf32> -> vector<8x384xf32>
    %c0_7 = arith.constant 0 : index
    %c0_8 = arith.constant 0 : index
    %c1 = arith.constant 1 : index
    %6 = vector.load %arg1[%c0_7, %c0_8, %c1] : memref<1x16x512xbf16, #tpu.memory_space<vmem>>, vector<1x16x384xbf16>
    %7 = vector.shape_cast %6 : vector<1x16x384xbf16> to vector<16x384xbf16>
    %c1_9 = arith.constant 1 : index
    %c0_10 = arith.constant 0 : index
    %c0_11 = arith.constant 0 : index
    %8 = vector.load %arg2[%c1_9, %c0_10, %c0_11] : memref<9x8x16xbf16, #tpu.memory_space<vmem>>, vector<1x8x16xbf16>
    %9 = vector.shape_cast %8 : vector<1x8x16xbf16> to vector<8x16xbf16>
    %cst_12 = arith.constant dense<0.000000e+00> : vector<8x384xf32>
    %10 = tpu.matmul %9, %7, %cst_12 {dimension_numbers = #tpu.dot_dimension_numbers<[1], [0], [0], [1], [0, 0, 1, 1], [], []>} : vector<8x16xbf16>, vector<16x384xbf16>, vector<8x384xf32> -> vector<8x384xf32>
    %11 = arith.addf %5, %10 : vector<8x384xf32>
    %c0_13 = arith.constant 0 : index
    %c0_14 = arith.constant 0 : index
    %c2 = arith.constant 2 : index
    %12 = vector.load %arg1[%c0_13, %c0_14, %c2] : memref<1x16x512xbf16, #tpu.memory_space<vmem>>, vector<1x16x384xbf16>
    %13 = vector.shape_cast %12 : vector<1x16x384xbf16> to vector<16x384xbf16>
    %c2_15 = arith.constant 2 : index
    %c0_16 = arith.constant 0 : index
    %c0_17 = arith.constant 0 : index
    %14 = vector.load %arg2[%c2_15, %c0_16, %c0_17] : memref<9x8x16xbf16, #tpu.memory_space<vmem>>, vector<1x8x16xbf16>
    %15 = vector.shape_cast %14 : vector<1x8x16xbf16> to vector<8x16xbf16>
    %cst_18 = arith.constant dense<0.000000e+00> : vector<8x384xf32>
    %16 = tpu.matmul %15, %13, %cst_18 {dimension_numbers = #tpu.dot_dimension_numbers<[1], [0], [0], [1], [0, 0, 1, 1], [], []>} : vector<8x16xbf16>, vector<16x384xbf16>, vector<8x384xf32> -> vector<8x384xf32>
    %17 = arith.addf %11, %16 : vector<8x384xf32>
    %c0_19 = arith.constant 0 : index
    %c0_20 = arith.constant 0 : index
    %c18 = arith.constant 18 : index
    %18 = vector.load %arg1[%c0_19, %c0_20, %c18] : memref<1x16x512xbf16, #tpu.memory_space<vmem>>, vector<1x16x384xbf16>
    %19 = vector.shape_cast %18 : vector<1x16x384xbf16> to vector<16x384xbf16>
    %c3 = arith.constant 3 : index
    %c0_21 = arith.constant 0 : index
    %c0_22 = arith.constant 0 : index
    %20 = vector.load %arg2[%c3, %c0_21, %c0_22] : memref<9x8x16xbf16, #tpu.memory_space<vmem>>, vector<1x8x16xbf16>
    %21 = vector.shape_cast %20 : vector<1x8x16xbf16> to vector<8x16xbf16>
    %cst_23 = arith.constant dense<0.000000e+00> : vector<8x384xf32>
    %22 = tpu.matmul %21, %19, %cst_23 {dimension_numbers = #tpu.dot_dimension_numbers<[1], [0], [0], [1], [0, 0, 1, 1], [], []>} : vector<8x16xbf16>, vector<16x384xbf16>, vector<8x384xf32> -> vector<8x384xf32>
    %23 = arith.addf %17, %22 : vector<8x384xf32>
    %c0_24 = arith.constant 0 : index
    %c0_25 = arith.constant 0 : index
    %c19 = arith.constant 19 : index
    %24 = vector.load %arg1[%c0_24, %c0_25, %c19] : memref<1x16x512xbf16, #tpu.memory_space<vmem>>, vector<1x16x384xbf16>
    %25 = vector.shape_cast %24 : vector<1x16x384xbf16> to vector<16x384xbf16>
    %c4 = arith.constant 4 : index
    %c0_26 = arith.constant 0 : index
    %c0_27 = arith.constant 0 : index
    %26 = vector.load %arg2[%c4, %c0_26, %c0_27] : memref<9x8x16xbf16, #tpu.memory_space<vmem>>, vector<1x8x16xbf16>
    %27 = vector.shape_cast %26 : vector<1x8x16xbf16> to vector<8x16xbf16>
    %cst_28 = arith.constant dense<0.000000e+00> : vector<8x384xf32>
    %28 = tpu.matmul %27, %25, %cst_28 {dimension_numbers = #tpu.dot_dimension_numbers<[1], [0], [0], [1], [0, 0, 1, 1], [], []>} : vector<8x16xbf16>, vector<16x384xbf16>, vector<8x384xf32> -> vector<8x384xf32>
    %29 = arith.addf %23, %28 : vector<8x384xf32>
    %c0_29 = arith.constant 0 : index
    %c0_30 = arith.constant 0 : index
    %c20 = arith.constant 20 : index
    %30 = vector.load %arg1[%c0_29, %c0_30, %c20] : memref<1x16x512xbf16, #tpu.memory_space<vmem>>, vector<1x16x384xbf16>
    %31 = vector.shape_cast %30 : vector<1x16x384xbf16> to vector<16x384xbf16>
    %c5 = arith.constant 5 : index
    %c0_31 = arith.constant 0 : index
    %c0_32 = arith.constant 0 : index
    %32 = vector.load %arg2[%c5, %c0_31, %c0_32] : memref<9x8x16xbf16, #tpu.memory_space<vmem>>, vector<1x8x16xbf16>
    %33 = vector.shape_cast %32 : vector<1x8x16xbf16> to vector<8x16xbf16>
    %cst_33 = arith.constant dense<0.000000e+00> : vector<8x384xf32>
    %34 = tpu.matmul %33, %31, %cst_33 {dimension_numbers = #tpu.dot_dimension_numbers<[1], [0], [0], [1], [0, 0, 1, 1], [], []>} : vector<8x16xbf16>, vector<16x384xbf16>, vector<8x384xf32> -> vector<8x384xf32>
    %35 = arith.addf %29, %34 : vector<8x384xf32>
    %c0_34 = arith.constant 0 : index
    %c0_35 = arith.constant 0 : index
    %c36 = arith.constant 36 : index
    %36 = vector.load %arg1[%c0_34, %c0_35, %c36] : memref<1x16x512xbf16, #tpu.memory_space<vmem>>, vector<1x16x384xbf16>
    %37 = vector.shape_cast %36 : vector<1x16x384xbf16> to vector<16x384xbf16>
    %c6 = arith.constant 6 : index
    %c0_36 = arith.constant 0 : index
    %c0_37 = arith.constant 0 : index
    %38 = vector.load %arg2[%c6, %c0_36, %c0_37] : memref<9x8x16xbf16, #tpu.memory_space<vmem>>, vector<1x8x16xbf16>
    %39 = vector.shape_cast %38 : vector<1x8x16xbf16> to vector<8x16xbf16>
    %cst_38 = arith.constant dense<0.000000e+00> : vector<8x384xf32>
    %40 = tpu.matmul %39, %37, %cst_38 {dimension_numbers = #tpu.dot_dimension_numbers<[1], [0], [0], [1], [0, 0, 1, 1], [], []>} : vector<8x16xbf16>, vector<16x384xbf16>, vector<8x384xf32> -> vector<8x384xf32>
    %41 = arith.addf %35, %40 : vector<8x384xf32>
    %c0_39 = arith.constant 0 : index
    %c0_40 = arith.constant 0 : index
    %c37 = arith.constant 37 : index
    %42 = vector.load %arg1[%c0_39, %c0_40, %c37] : memref<1x16x512xbf16, #tpu.memory_space<vmem>>, vector<1x16x384xbf16>
    %43 = vector.shape_cast %42 : vector<1x16x384xbf16> to vector<16x384xbf16>
    %c7 = arith.constant 7 : index
    %c0_41 = arith.constant 0 : index
    %c0_42 = arith.constant 0 : index
    %44 = vector.load %arg2[%c7, %c0_41, %c0_42] : memref<9x8x16xbf16, #tpu.memory_space<vmem>>, vector<1x8x16xbf16>
    %45 = vector.shape_cast %44 : vector<1x8x16xbf16> to vector<8x16xbf16>
    %cst_43 = arith.constant dense<0.000000e+00> : vector<8x384xf32>
    %46 = tpu.matmul %45, %43, %cst_43 {dimension_numbers = #tpu.dot_dimension_numbers<[1], [0], [0], [1], [0, 0, 1, 1], [], []>} : vector<8x16xbf16>, vector<16x384xbf16>, vector<8x384xf32> -> vector<8x384xf32>
    %47 = arith.addf %41, %46 : vector<8x384xf32>
    %c0_44 = arith.constant 0 : index
    %c0_45 = arith.constant 0 : index
    %c38 = arith.constant 38 : index
    %48 = vector.load %arg1[%c0_44, %c0_45, %c38] : memref<1x16x512xbf16, #tpu.memory_space<vmem>>, vector<1x16x384xbf16>
    %49 = vector.shape_cast %48 : vector<1x16x384xbf16> to vector<16x384xbf16>
    %c8 = arith.constant 8 : index
    %c0_46 = arith.constant 0 : index
    %c0_47 = arith.constant 0 : index
    %50 = vector.load %arg2[%c8, %c0_46, %c0_47] : memref<9x8x16xbf16, #tpu.memory_space<vmem>>, vector<1x8x16xbf16>
    %51 = vector.shape_cast %50 : vector<1x8x16xbf16> to vector<8x16xbf16>
    %cst_48 = arith.constant dense<0.000000e+00> : vector<8x384xf32>
    %52 = tpu.matmul %51, %49, %cst_48 {dimension_numbers = #tpu.dot_dimension_numbers<[1], [0], [0], [1], [0, 0, 1, 1], [], []>} : vector<8x16xbf16>, vector<16x384xbf16>, vector<8x384xf32> -> vector<8x384xf32>
    %53 = arith.addf %47, %52 : vector<8x384xf32>
    %54 = vector.broadcast %0 : vector<8x1xf32> to vector<8x384xf32>
    %55 = arith.addf %53, %54 : vector<8x384xf32>
    %c0_49 = arith.constant 0 : index
    %c0_50 = arith.constant 0 : index
    %c0_51 = arith.constant 0 : index
    %56 = vector.load %arg4[%c0_49, %c0_50, %c0_51] : memref<1x8x384xf32, #tpu.memory_space<vmem>>, vector<1x8x384xf32>
    %57 = vector.shape_cast %56 : vector<1x8x384xf32> to vector<8x384xf32>
    %58 = vector.shape_cast %55 : vector<8x384xf32> to vector<1x8x384xf32>
    tpu.vector_store %arg4[%c0_49, %c0_50, %c0_51], %58 {strides = array<i32>} : memref<1x8x384xf32, #tpu.memory_space<vmem>>, vector<1x8x384xf32>,
    return
  }
  func.func @transform_0(%arg0: i32) -> (i32, i32, i32) {
    %c0_i32 = arith.constant 0 : i32
    %c0_i32_0 = arith.constant 0 : i32
    %c0_i32_1 = arith.constant 0 : i32
    return %arg0, %c0_i32, %c0_i32_0 : i32, i32, i32
  }
  func.func @transform_1(%arg0: i32) -> (i32, i32, i32) {
    %c0_i32 = arith.constant 0 : i32
    %c0_i32_0 = arith.constant 0 : i32
    %c0_i32_1 = arith.constant 0 : i32
    %c0_i32_2 = arith.constant 0 : i32
    return %c0_i32, %c0_i32_0, %c0_i32_1 : i32, i32, i32
  }
  func.func @transform_2(%arg0: i32) -> (i32, i32) {
    %c0_i32 = arith.constant 0 : i32
    %c0_i32_0 = arith.constant 0 : i32
    %c0_i32_1 = arith.constant 0 : i32
    return %c0_i32, %c0_i32_0 : i32, i32
  }
  func.func @transform_3(%arg0: i32) -> (i32, i32, i32) {
    %c0_i32 = arith.constant 0 : i32
    %c0_i32_0 = arith.constant 0 : i32
    %c0_i32_1 = arith.constant 0 : i32
    return %arg0, %c0_i32, %c0_i32_0 : i32, i32, i32
  }
}

</mosaic_0001>

<llo_original>
// kernel: tpu_custom_call.1
$region0: #{tpu_custom_call.1}
  #allocation0 [shape = 'u32[]', space=smem, size = 0x4, offset = 0x4, fixed_abs, tag = 'smem constant byte address 0x4 - core index']
  #allocation1 [shape = 'u32[72,128]{1,0:T(1,128)}', space=vmem, size = 0x9000, scoped, tag = 'internal scratch']
  %s0 = inlined_call_operand.hbm [shape: bf16[2,16,512], index: 0, kind: input, shape index: {}]
  %s1 = inlined_call_operand.hbm [shape: bf16[9,8,16], index: 1, kind: input, shape index: {}]
  %s2 = inlined_call_operand.vmem [shape: f32[8,1], index: 2, kind: input, shape index: {}]
  %s3 = inlined_call_operand.hbm [shape: f32[2,8,384], index: 3, kind: output, shape index: {}]
  %s4 = sld [smem:[#allocation0]]
  $region53: #{tpu_custom_call.1} parent=0
    _
  %s6 = ssub.s32 1, %s4
  %s7 = scalar_select 0, %s6, %s4
  $region1: #{tpu_custom_call.1} parent=0
    #allocation2 [shape = 'u8[32768]{0}', space=vmem, size = 0x8000, scoped, tag = 'input window, operand 0']
    #allocation3 [shape = 's32[2]{0}', space=sflag, size = 0x8, scoped, tag = 'scoped memory for tpu_custom_call.1']
    #allocation4 [shape = 's32[2]{0}', space=sflag, size = 0x8, scoped, tag = 'scoped memory for tpu_custom_call.1']
    #allocation5 [shape = 'u8[18432]{0}', space=vmem, size = 0x4800, scoped, tag = 'input window, operand 1, single buffered']
    #allocation6 [shape = 's32[1]{0}', space=sflag, size = 0x4, scoped, tag = 'scoped memory for tpu_custom_call.1']
    #allocation7 [shape = 'u8[24576]{0}', space=vmem, size = 0x6000, scoped, tag = 'output window, operand 0']
    %8 = vsyncpa [#allocation3], 0
    %s9 = scalar_lea.sflag [#allocation3], 1
    %10 = vsyncpa %s9, 0
    %11 = vsyncpa [#allocation6], 0
    %12 = vsyncpa [#allocation4], 0
    %s13 = scalar_lea.sflag [#allocation4], 1
    %14 = vsyncpa %s13, 0
    loop: start=0, step=1, limit=4
    $region2: #{tpu_custom_call.1} parent=1 // loop_pre_header
      _
    $region3: #{tpu_custom_call.1} parent=1 // loop_header
      %s16 = sphi 0, %s20
      %p17 = scmp.ge.s32.totalorder %s16, 4
      %s26 = sphi 0, %s28
      %s29 = sphi 0, %s26
      %s30 = sphi 0, %s29
      %s46 = sphi 0, %s30
      %s50 = sphi 0, %s50
      %s52 = sphi 0, %s50
      %s53 = sphi 0, %s52
      %s67 = sphi 0, %s53
      %s71 = sphi 0, %s71
      %s73 = sphi 0, %s71
      %s74 = sphi 0, %s73
      %s88 = sphi 0, %s74
      %s94 = sphi 0, %s96
      %s97 = sphi 0, %s94
      %s98 = sphi 0, %s97
      %s114 = sphi 0, %s98
    $region4: #{tpu_custom_call.1} parent=1 // loop_header_branch
      %19 = sbr.rel (%p17) target = $region8
    $region5: #{tpu_custom_call.1} parent=1 // loop_body
      %s21 = ssub.s32 %s16, 1
      %s22 = ssub.s32 %s16, 2
      %s23 = sadd.s32 %s16, 1
      %s24 = ssub.s32 %s16, %s23
      %p25 = scmp.eq.s32.totalorder %s24, 0
      %s27 = sadd.s32 %s26, 1
      %s28 = scalar_select %p25, %s26, %s27
      %p31 = pneg %p25
      %p32 = scmp.eq.s32.totalorder %s16, 1
      %p33 = por %p31, %p32
      %p34 = scmp.ne.s32.totalorder %s26, %s29
      %p35 = scmp.eq.s32.totalorder %s16, 0
      %p36 = por %p34, %p35
      %p37 = scmp.ne.s32.totalorder %s26, %s29
      %p38 = scmp.eq.s32.totalorder %s21, 1
      %p39 = por %p37, %p38
      %p40 = scmp.ne.s32.totalorder %s29, %s30
      %p41 = scmp.eq.s32.totalorder %s21, 0
      %p42 = por %p40, %p41
      %p43 = scmp.ne.s32.totalorder %s29, %s30
      %p44 = scmp.eq.s32.totalorder %s22, 1
      %p45 = por %p43, %p44
      %p47 = scmp.ne.s32.totalorder %s30, %s46
      %p48 = scmp.eq.s32.totalorder %s22, 0
      %p49 = por %p47, %p48
      %s51 = sadd.s32 %s50, 1
      %p54 = scmp.eq.s32.totalorder %s16, 1
      %p55 = scmp.ne.s32.totalorder %s50, %s52
      %p56 = scmp.eq.s32.totalorder %s16, 0
      %p57 = por %p55, %p56
      %p58 = scmp.ne.s32.totalorder %s50, %s52
      %p59 = scmp.eq.s32.totalorder %s21, 1
      %p60 = por %p58, %p59
      %p61 = scmp.ne.s32.totalorder %s52, %s53
      %p62 = scmp.eq.s32.totalorder %s21, 0
      %p63 = por %p61, %p62
      %p64 = scmp.ne.s32.totalorder %s52, %s53
      %p65 = scmp.eq.s32.totalorder %s22, 1
      %p66 = por %p64, %p65
      %p68 = scmp.ne.s32.totalorder %s53, %s67
      %p69 = scmp.eq.s32.totalorder %s22, 0
      %p70 = por %p68, %p69
      %s72 = sadd.s32 %s71, 1
      %p75 = scmp.eq.s32.totalorder %s16, 1
      %p76 = scmp.ne.s32.totalorder %s71, %s73
      %p77 = scmp.eq.s32.totalorder %s16, 0
      %p78 = por %p76, %p77
      %p79 = scmp.ne.s32.totalorder %s71, %s73
      %p80 = scmp.eq.s32.totalorder %s21, 1
      %p81 = por %p79, %p80
      %p82 = scmp.ne.s32.totalorder %s73, %s74
      %p83 = scmp.eq.s32.totalorder %s21, 0
      %p84 = por %p82, %p83
      %p85 = scmp.ne.s32.totalorder %s73, %s74
      %p86 = scmp.eq.s32.totalorder %s22, 1
      %p87 = por %p85, %p86
      %p89 = scmp.ne.s32.totalorder %s74, %s88
      %p90 = scmp.eq.s32.totalorder %s22, 0
      %p91 = por %p89, %p90
      %s92 = ssub.s32 %s16, %s23
      %p93 = scmp.eq.s32.totalorder %s92, 0
      %s95 = sadd.s32 %s94, 1
      %s96 = scalar_select %p93, %s94, %s95
      %p99 = pneg %p93
      %p100 = scmp.eq.s32.totalorder %s16, 1
      %p101 = por %p99, %p100
      %p102 = scmp.ne.s32.totalorder %s94, %s97
      %p103 = scmp.eq.s32.totalorder %s16, 0
      %p104 = por %p102, %p103
      %p105 = scmp.ne.s32.totalorder %s94, %s97
      %p106 = scmp.eq.s32.totalorder %s21, 1
      %p107 = por %p105, %p106
      %p108 = scmp.ne.s32.totalorder %s97, %s98
      %p109 = scmp.eq.s32.totalorder %s21, 0
      %p110 = por %p108, %p109
      %p111 = scmp.ne.s32.totalorder %s97, %s98
      %p112 = scmp.eq.s32.totalorder %s22, 1
      %p113 = por %p111, %p112
      %p115 = scmp.ne.s32.totalorder %s98, %s114
      %p116 = scmp.eq.s32.totalorder %s22, 0
      %p117 = por %p115, %p116
      %p118 = scmp.le.s32.totalorder 1, %s16
      %p119 = scmp.lt.s32.totalorder %s16, 3
      %p120 = pnand %p118, %p119
      %p121 = pneg %p120
      // Predicated region
      $region9: #{tpu_custom_call.1} parent=5 // pred_check
        _
      $region10: #{tpu_custom_call.1} parent=5 // pred_check_branch
        %123 = sbr.rel (%p120) target = $region12
      $region11: #{tpu_custom_call.1} parent=5 // pred_region
        %s124 = ssub.s32 %s16, 1
        // Predicated region
        $region13: #{tpu_custom_call.1} parent=11 // pred_check
          %p125 = pneg %p63
        $region14: #{tpu_custom_call.1} parent=11 // pred_check_branch
          %127 = sbr.rel (%p125) target = $region16
        $region15: #{tpu_custom_call.1} parent=11 // pred_region
          %129 = vsyncadd [#allocation6], 0
          %s130 = sshll.u32 %s1, 4
          %s131 = int_to_ptr.hbm [resolvable:$true] %s130
          %s132 = sshll.u32 [#allocation5], 4
          %s133 = int_to_ptr.vmem [resolvable:$true] %s132
          %138 = dma.hbm_to_vmem [thread:$0]  %s131, 576, %s133, [#allocation6], 64, 64, 4
        $region16: #{tpu_custom_call.1} parent=11 // pred_fallthru
          _
        // Predicated region
        $region17: #{tpu_custom_call.1} parent=11 // pred_check
          %p139 = pneg %p84
        $region18: #{tpu_custom_call.1} parent=11 // pred_check_branch
          %141 = sbr.rel (%p139) target = $region20
        $region19: #{tpu_custom_call.1} parent=11 // pred_region
          _
        $region20: #{tpu_custom_call.1} parent=11 // pred_fallthru
          _
      $region12: #{tpu_custom_call.1} parent=5 // pred_fallthru
        _
      %p142 = scmp.lt.s32.totalorder %s16, 2
      // Predicated region
      $region21: #{tpu_custom_call.1} parent=5 // pred_check
        %p143 = pneg %p142
      $region22: #{tpu_custom_call.1} parent=5 // pred_check_branch
        %145 = sbr.rel (%p143) target = $region24
      $region23: #{tpu_custom_call.1} parent=5 // pred_region
        // Predicated region
        $region25: #{tpu_custom_call.1} parent=23 // pred_check
          %p146 = pneg %p36
        $region26: #{tpu_custom_call.1} parent=23 // pred_check_branch
          %148 = sbr.rel (%p146) target = $region28
        $region27: #{tpu_custom_call.1} parent=23 // pred_region
          %s149 = sand.u32 %s26, 1
          %s150 = scalar_lea.sflag [#allocation3], %s149
          %s151 = sand.u32 %s26, 1
          %s152 = smul.addr %s151, 32
          %s153 = scalar_lea.vmem [#allocation2], %s152
          %155 = vsyncadd %s150, 0
          %s156 = smul.addr %s16, 8
          %s157 = smul.addr %s156, 4
          %s158 = scalar_lea.hbm %s0, %s157
          %s159 = sshll.u32 %s158, 4
          %s160 = int_to_ptr.hbm [resolvable:$true] %s159
          %s161 = sshll.u32 %s153, 4
          %s162 = int_to_ptr.vmem [resolvable:$true] %s161
          %167 = dma.hbm_to_vmem [thread:$0]  %s160, 512, %s162, %s150, 256, 256, 16
        $region28: #{tpu_custom_call.1} parent=23 // pred_fallthru
          _
      $region24: #{tpu_custom_call.1} parent=5 // pred_fallthru
        _
      %p168 = scmp.le.s32.totalorder 1, %s16
      %p169 = scmp.lt.s32.totalorder %s16, 3
      %p170 = pnand %p168, %p169
      %p171 = pneg %p170
      // Predicated region
      $region29: #{tpu_custom_call.1} parent=5 // pred_check
        _
      $region30: #{tpu_custom_call.1} parent=5 // pred_check_branch
        %173 = sbr.rel (%p170) target = $region32
      $region31: #{tpu_custom_call.1} parent=5 // pred_region
        %s174 = ssub.s32 %s16, 1
        %s175 = sand.u32 %s29, 1
        %s176 = scalar_lea.sflag [#allocation3], %s175
        %s177 = sand.u32 %s29, 1
        %s178 = smul.addr %s177, 32
        %s179 = scalar_lea.vmem [#allocation2], %s178
        // Predicated region
        $region33: #{tpu_custom_call.1} parent=31 // pred_check
          %p180 = pneg %p42
        $region34: #{tpu_custom_call.1} parent=31 // pred_check_branch
          %182 = sbr.rel (%p180) target = $region36
        $region35: #{tpu_custom_call.1} parent=31 // pred_region
          %184 = dma.done %s176, 512
        $region36: #{tpu_custom_call.1} parent=31 // pred_fallthru
          _
        // Predicated region
        $region37: #{tpu_custom_call.1} parent=31 // pred_check
          %p185 = pneg %p63
        $region38: #{tpu_custom_call.1} parent=31 // pred_check_branch
          %187 = sbr.rel (%p185) target = $region40
        $region39: #{tpu_custom_call.1} parent=31 // pred_region
          %189 = dma.done [#allocation6], 576
        $region40: #{tpu_custom_call.1} parent=31 // pred_fallthru
          _
        %s190 = sand.u32 %s29, 1
        %s191 = scalar_lea.sflag [#allocation3], %s190
        %s192 = sand.u32 %s29, 1
        %s193 = smul.addr %s192, 32
        %s194 = scalar_lea.vmem [#allocation2], %s193
        %p195 = pneg %p42
        %p196 = pneg %p39
        %p197 = pneg %p63
        %p198 = pneg %p60
        %p199 = pneg %p84
        %p200 = pneg %p81
        %p201 = pneg %p110
        %p202 = pneg %p107
        %s203 = sand.u32 %s97, 1
        %s204 = scalar_lea.sflag [#allocation4], %s203
        %s205 = sand.u32 %s97, 1
        %s206 = smul.addr %s205, 24
        %s207 = scalar_lea.vmem [#allocation7], %s206
        %v209 = vld [vmem:[%s2] sm:$0xff]
        %v210 = vld [vmem:[%s179] sm:$0xff]
        %v211 = vld [vmem:[%s179 + $0x8] sm:$0xf]
        %v212 = vld [vmem:[%s179 + $0x10] sm:$0xff]
        %v213 = vld [vmem:[%s179 + $0x18] sm:$0xf]
        %v214 = vld [vmem:[#allocation5] sm:$0xf]
        %v215 = vld [vmem:[%s179] sm:$0xff]
        %v216 = vld [vmem:[%s179 + $0x8] sm:$0xff]
        %v217 = vld [vmem:[%s179 + $0x10] sm:$0xff]
        %v218 = vld [vmem:[%s179 + $0x18] sm:$0xff]
        %s219 = scalar_lea.vmem [#allocation5], 4
        %v220 = vld [vmem:[%s219] sm:$0xf]
        %v225 = vunpack.c.l.b16 %v215
        %v226 = vunpack.c.h.b16 %v215
        %v227 = vunpack.c.l.b16 %v216
        %v228 = vunpack.c.h.b16 %v216
        %v229 = vunpack.c.l.b16 %v217
        %v230 = vunpack.c.h.b16 %v217
        %v231 = vunpack.c.l.b16 %v218
        %v232 = vunpack.c.h.b16 %v218
        %v233 = vpack.c.b16 %v229, %v225
        %v234 = vpack.c.b16 %v230, %v226
        %v235 = vpack.c.b16 %v231, %v227
        %v236 = vpack.c.b16 %v232, %v228
        %237 = vrot.lane.b32.xlu0 %v233, 127
        %v238 = vpop.permute.xlu0 %237
        %239 = vrot.lane.b32.xlu0 %v234, 127
        %v240 = vpop.permute.xlu0 %239
        %241 = vrot.lane.b32.xlu0 %v235, 127
        %v242 = vpop.permute.xlu0 %241
        %243 = vrot.lane.b32.xlu0 %v236, 127
        %v244 = vpop.permute.xlu0 %243
        %vm245 = vcmask 1039360
        %v246 = vsel %vm245, %v238, %v240
        %v247 = vsel %vm245, %v240, %v242
        %v248 = vsel %vm245, %v242, %v244
        %vm252 = vcmask 130048
        %v254 = vsel %vm252, %v220, 0
        %256 = vmatpush.bf16.msra.mxu0 0
        %257 = vmatpush.bf16.msra.mxu0 0
        %258 = vmatpush.bf16.msra.mxu0 0
        %259 = vmatpush.bf16.msra.mxu0 0
        %260 = vmatpush.bf16.msra.mxu0 0
        %261 = vmatpush.bf16.msra.mxu0 0
        %262 = vmatpush.bf16.msra.mxu0 0
        %263 = vmatpush.bf16.msra.mxu0 %v246
        %264 = vmatmul.bf16.gmra.mxu0 %v254
        %v265 = vpop.f32.mrf.mxu0
        %v266 = vadd.f32 0.0, %v265
        %v267 = vpop.f32.mrf.mxu0
        %268 = vdwg.mxu0
        %269 = vmatpush.bf16.msra.mxu0 0
        %270 = vmatpush.bf16.msra.mxu0 0
        %271 = vmatpush.bf16.msra.mxu0 0
        %272 = vmatpush.bf16.msra.mxu0 0
        %273 = vmatpush.bf16.msra.mxu0 0
        %274 = vmatpush.bf16.msra.mxu0 0
        %275 = vmatpush.bf16.msra.mxu0 0
        %276 = vmatpush.bf16.msra.mxu0 %v247
        %277 = vmatmul.bf16.gmra.mxu0 %v254
        %v278 = vpop.f32.mrf.mxu0
        %v279 = vadd.f32 0.0, %v278
        %v280 = vpop.f32.mrf.mxu0
        %281 = vdwg.mxu0
        %282 = vmatpush.bf16.msra.mxu0 0
        %283 = vmatpush.bf16.msra.mxu0 0
        %284 = vmatpush.bf16.msra.mxu0 0
        %285 = vmatpush.bf16.msra.mxu0 0
        %286 = vmatpush.bf16.msra.mxu0 0
        %287 = vmatpush.bf16.msra.mxu0 0
        %288 = vmatpush.bf16.msra.mxu0 0
        %289 = vmatpush.bf16.msra.mxu0 %v248
        %290 = vmatmul.bf16.gmra.mxu0 %v254
        %v291 = vpop.f32.mrf.mxu0
        %v292 = vadd.f32 0.0, %v291
        %v293 = vpop.f32.mrf.mxu0
        %294 = vdwg.mxu0
        %v299 = vunpack.c.l.b16 %v210
        %v300 = vunpack.c.h.b16 %v210
        %v301 = vunpack.c.l.b16 %v211
        %v302 = vunpack.c.l.b16 %v212
        %v303 = vunpack.c.h.b16 %v212
        %v304 = vunpack.c.l.b16 %v213
        %v305 = vpack.c.b16 %v302, %v299
        %v306 = vpack.c.b16 %v303, %v300
        %v307 = vpack.c.b16 %v304, %v301
        %v312 = vsel %vm252, %v214, 0
        %314 = vmatpush.bf16.msra.mxu0 0
        %315 = vmatpush.bf16.msra.mxu0 0
        %316 = vmatpush.bf16.msra.mxu0 0
        %317 = vmatpush.bf16.msra.mxu0 0
        %318 = vmatpush.bf16.msra.mxu0 0
        %319 = vmatpush.bf16.msra.mxu0 0
        %320 = vmatpush.bf16.msra.mxu0 0
        %321 = vmatpush.bf16.msra.mxu0 %v305
        %322 = vmatmul.bf16.gmra.mxu0 %v312
        %v323 = vpop.f32.mrf.mxu0
        %v324 = vadd.f32 %v266, %v323
        %v325 = vpop.f32.mrf.mxu0
        %326 = vdwg.mxu0
        %327 = vmatpush.bf16.msra.mxu0 0
        %328 = vmatpush.bf16.msra.mxu0 0
        %329 = vmatpush.bf16.msra.mxu0 0
        %330 = vmatpush.bf16.msra.mxu0 0
        %331 = vmatpush.bf16.msra.mxu0 0
        %332 = vmatpush.bf16.msra.mxu0 0
        %333 = vmatpush.bf16.msra.mxu0 0
        %334 = vmatpush.bf16.msra.mxu0 %v306
        %335 = vmatmul.bf16.gmra.mxu0 %v312
        %v336 = vpop.f32.mrf.mxu0
        %v337 = vadd.f32 %v279, %v336
        %v338 = vpop.f32.mrf.mxu0
        %339 = vdwg.mxu0
        %340 = vmatpush.bf16.msra.mxu0 0
        %341 = vmatpush.bf16.msra.mxu0 0
        %342 = vmatpush.bf16.msra.mxu0 0
        %343 = vmatpush.bf16.msra.mxu0 0
        %344 = vmatpush.bf16.msra.mxu0 0
        %345 = vmatpush.bf16.msra.mxu0 0
        %346 = vmatpush.bf16.msra.mxu0 0
        %347 = vmatpush.bf16.msra.mxu0 %v307
        %348 = vmatmul.bf16.gmra.mxu0 %v312
        %v349 = vpop.f32.mrf.mxu0
        %v350 = vadd.f32 %v292, %v349
        %v351 = vpop.f32.mrf.mxu0
        %352 = vdwg.mxu0
        %s353 = scalar_lea.vmem [#allocation5], 8
        %v354 = vld [vmem:[%s353] sm:$0xf]
        %355 = vrot.lane.b32.xlu0 %v233, 126
        %v356 = vpop.permute.xlu0 %355
        %357 = vrot.lane.b32.xlu0 %v234, 126
        %v358 = vpop.permute.xlu0 %357
        %359 = vrot.lane.b32.xlu0 %v235, 126
        %v360 = vpop.permute.xlu0 %359
        %361 = vrot.lane.b32.xlu0 %v236, 126
        %v362 = vpop.permute.xlu0 %361
        %vm363 = vcmask 1031168
        %v364 = vsel %vm363, %v356, %v358
        %v365 = vsel %vm363, %v358, %v360
        %v366 = vsel %vm363, %v360, %v362
        %v371 = vsel %vm252, %v354, 0
        %373 = vmatpush.bf16.msra.mxu0 0
        %374 = vmatpush.bf16.msra.mxu0 0
        %375 = vmatpush.bf16.msra.mxu0 0
        %376 = vmatpush.bf16.msra.mxu0 0
        %377 = vmatpush.bf16.msra.mxu0 0
        %378 = vmatpush.bf16.msra.mxu0 0
        %379 = vmatpush.bf16.msra.mxu0 0
        %380 = vmatpush.bf16.msra.mxu0 %v364
        %381 = vmatmul.bf16.gmra.mxu0 %v371
        %v382 = vpop.f32.mrf.mxu0
        %v383 = vadd.f32 0.0, %v382
        %v384 = vpop.f32.mrf.mxu0
        %385 = vdwg.mxu0
        %386 = vmatpush.bf16.msra.mxu0 0
        %387 = vmatpush.bf16.msra.mxu0 0
        %388 = vmatpush.bf16.msra.mxu0 0
        %389 = vmatpush.bf16.msra.mxu0 0
        %390 = vmatpush.bf16.msra.mxu0 0
        %391 = vmatpush.bf16.msra.mxu0 0
        %392 = vmatpush.bf16.msra.mxu0 0
        %393 = vmatpush.bf16.msra.mxu0 %v365
        %394 = vmatmul.bf16.gmra.mxu0 %v371
        %v395 = vpop.f32.mrf.mxu0
        %v396 = vadd.f32 0.0, %v395
        %v397 = vpop.f32.mrf.mxu0
        %398 = vdwg.mxu0
        %399 = vmatpush.bf16.msra.mxu0 0
        %400 = vmatpush.bf16.msra.mxu0 0
        %401 = vmatpush.bf16.msra.mxu0 0
        %402 = vmatpush.bf16.msra.mxu0 0
        %403 = vmatpush.bf16.msra.mxu0 0
        %404 = vmatpush.bf16.msra.mxu0 0
        %405 = vmatpush.bf16.msra.mxu0 0
        %406 = vmatpush.bf16.msra.mxu0 %v366
        %407 = vmatmul.bf16.gmra.mxu0 %v371
        %v408 = vpop.f32.mrf.mxu0
        %v409 = vadd.f32 0.0, %v408
        %v410 = vpop.f32.mrf.mxu0
        %411 = vdwg.mxu0
        %v412 = vadd.f32 %v324, %v383
        %v413 = vadd.f32 %v337, %v396
        %v414 = vadd.f32 %v350, %v409
        %s415 = scalar_lea.vmem [#allocation5], 12
        %v416 = vld [vmem:[%s415] sm:$0xf]
        %417 = vrot.lane.b32.xlu0 %v233, 110
        %v418 = vpop.permute.xlu0 %417
        %419 = vrot.lane.b32.xlu0 %v234, 110
        %v420 = vpop.permute.xlu0 %419
        %421 = vrot.lane.b32.xlu0 %v235, 110
        %v422 = vpop.permute.xlu0 %421
        %423 = vrot.lane.b32.xlu0 %v236, 110
        %v424 = vpop.permute.xlu0 %423
        %vm425 = vcmask 900096
        %v426 = vsel %vm425, %v418, %v420
        %v427 = vsel %vm425, %v420, %v422
        %v428 = vsel %vm425, %v422, %v424
        %v433 = vsel %vm252, %v416, 0
        %435 = vmatpush.bf16.msra.mxu0 0
        %436 = vmatpush.bf16.msra.mxu0 0
        %437 = vmatpush.bf16.msra.mxu0 0
        %438 = vmatpush.bf16.msra.mxu0 0
        %439 = vmatpush.bf16.msra.mxu0 0
        %440 = vmatpush.bf16.msra.mxu0 0
        %441 = vmatpush.bf16.msra.mxu0 0
        %442 = vmatpush.bf16.msra.mxu0 %v426
        %443 = vmatmul.bf16.gmra.mxu0 %v433
        %v444 = vpop.f32.mrf.mxu0
        %v445 = vadd.f32 0.0, %v444
        %v446 = vpop.f32.mrf.mxu0
        %447 = vdwg.mxu0
        %448 = vmatpush.bf16.msra.mxu0 0
        %449 = vmatpush.bf16.msra.mxu0 0
        %450 = vmatpush.bf16.msra.mxu0 0
        %451 = vmatpush.bf16.msra.mxu0 0
        %452 = vmatpush.bf16.msra.mxu0 0
        %453 = vmatpush.bf16.msra.mxu0 0
        %454 = vmatpush.bf16.msra.mxu0 0
        %455 = vmatpush.bf16.msra.mxu0 %v427
        %456 = vmatmul.bf16.gmra.mxu0 %v433
        %v457 = vpop.f32.mrf.mxu0
        %v458 = vadd.f32 0.0, %v457
        %v459 = vpop.f32.mrf.mxu0
        %460 = vdwg.mxu0
        %461 = vmatpush.bf16.msra.mxu0 0
        %462 = vmatpush.bf16.msra.mxu0 0
        %463 = vmatpush.bf16.msra.mxu0 0
        %464 = vmatpush.bf16.msra.mxu0 0
        %465 = vmatpush.bf16.msra.mxu0 0
        %466 = vmatpush.bf16.msra.mxu0 0
        %467 = vmatpush.bf16.msra.mxu0 0
        %468 = vmatpush.bf16.msra.mxu0 %v428
        %469 = vmatmul.bf16.gmra.mxu0 %v433
        %v470 = vpop.f32.mrf.mxu0
        %v471 = vadd.f32 0.0, %v470
        %v472 = vpop.f32.mrf.mxu0
        %473 = vdwg.mxu0
        %v474 = vadd.f32 %v412, %v445
        %v475 = vadd.f32 %v413, %v458
        %v476 = vadd.f32 %v414, %v471
        %s477 = scalar_lea.vmem [#allocation5], 16
        %v478 = vld [vmem:[%s477] sm:$0xf]
        %479 = vrot.lane.b32.xlu0 %v233, 109
        %v480 = vpop.permute.xlu0 %479
        %481 = vrot.lane.b32.xlu0 %v234, 109
        %v482 = vpop.permute.xlu0 %481
        %483 = vrot.lane.b32.xlu0 %v235, 109
        %v484 = vpop.permute.xlu0 %483
        %485 = vrot.lane.b32.xlu0 %v236, 109
        %v486 = vpop.permute.xlu0 %485
        %vm487 = vcmask 891904
        %v488 = vsel %vm487, %v480, %v482
        %v489 = vsel %vm487, %v482, %v484
        %v490 = vsel %vm487, %v484, %v486
        %v495 = vsel %vm252, %v478, 0
        %497 = vmatpush.bf16.msra.mxu0 0
        %498 = vmatpush.bf16.msra.mxu0 0
        %499 = vmatpush.bf16.msra.mxu0 0
        %500 = vmatpush.bf16.msra.mxu0 0
        %501 = vmatpush.bf16.msra.mxu0 0
        %502 = vmatpush.bf16.msra.mxu0 0
        %503 = vmatpush.bf16.msra.mxu0 0
        %504 = vmatpush.bf16.msra.mxu0 %v488
        %505 = vmatmul.bf16.gmra.mxu0 %v495
        %v506 = vpop.f32.mrf.mxu0
        %v507 = vadd.f32 0.0, %v506
        %v508 = vpop.f32.mrf.mxu0
        %509 = vdwg.mxu0
        %510 = vmatpush.bf16.msra.mxu0 0
        %511 = vmatpush.bf16.msra.mxu0 0
        %512 = vmatpush.bf16.msra.mxu0 0
        %513 = vmatpush.bf16.msra.mxu0 0
        %514 = vmatpush.bf16.msra.mxu0 0
        %515 = vmatpush.bf16.msra.mxu0 0
        %516 = vmatpush.bf16.msra.mxu0 0
        %517 = vmatpush.bf16.msra.mxu0 %v489
        %518 = vmatmul.bf16.gmra.mxu0 %v495
        %v519 = vpop.f32.mrf.mxu0
        %v520 = vadd.f32 0.0, %v519
        %v521 = vpop.f32.mrf.mxu0
        %522 = vdwg.mxu0
        %523 = vmatpush.bf16.msra.mxu0 0
        %524 = vmatpush.bf16.msra.mxu0 0
        %525 = vmatpush.bf16.msra.mxu0 0
        %526 = vmatpush.bf16.msra.mxu0 0
        %527 = vmatpush.bf16.msra.mxu0 0
        %528 = vmatpush.bf16.msra.mxu0 0
        %529 = vmatpush.bf16.msra.mxu0 0
        %530 = vmatpush.bf16.msra.mxu0 %v490
        %531 = vmatmul.bf16.gmra.mxu0 %v495
        %v532 = vpop.f32.mrf.mxu0
        %v533 = vadd.f32 0.0, %v532
        %v534 = vpop.f32.mrf.mxu0
        %535 = vdwg.mxu0
        %v536 = vadd.f32 %v474, %v507
        %v537 = vadd.f32 %v475, %v520
        %v538 = vadd.f32 %v476, %v533
        %s539 = scalar_lea.vmem [#allocation5], 20
        %v540 = vld [vmem:[%s539] sm:$0xf]
        %541 = vrot.lane.b32.xlu0 %v233, 108
        %v542 = vpop.permute.xlu0 %541
        %543 = vrot.lane.b32.xlu0 %v234, 108
        %v544 = vpop.permute.xlu0 %543
        %545 = vrot.lane.b32.xlu0 %v235, 108
        %v546 = vpop.permute.xlu0 %545
        %547 = vrot.lane.b32.xlu0 %v236, 108
        %v548 = vpop.permute.xlu0 %547
        %vm549 = vcmask 883712
        %v550 = vsel %vm549, %v542, %v544
        %v551 = vsel %vm549, %v544, %v546
        %v552 = vsel %vm549, %v546, %v548
        %v557 = vsel %vm252, %v540, 0
        %559 = vmatpush.bf16.msra.mxu0 0
        %560 = vmatpush.bf16.msra.mxu0 0
        %561 = vmatpush.bf16.msra.mxu0 0
        %562 = vmatpush.bf16.msra.mxu0 0
        %563 = vmatpush.bf16.msra.mxu0 0
        %564 = vmatpush.bf16.msra.mxu0 0
        %565 = vmatpush.bf16.msra.mxu0 0
        %566 = vmatpush.bf16.msra.mxu0 %v550
        %567 = vmatmul.bf16.gmra.mxu0 %v557
        %v568 = vpop.f32.mrf.mxu0
        %v569 = vadd.f32 0.0, %v568
        %v570 = vpop.f32.mrf.mxu0
        %571 = vdwg.mxu0
        %572 = vmatpush.bf16.msra.mxu0 0
        %573 = vmatpush.bf16.msra.mxu0 0
        %574 = vmatpush.bf16.msra.mxu0 0
        %575 = vmatpush.bf16.msra.mxu0 0
        %576 = vmatpush.bf16.msra.mxu0 0
        %577 = vmatpush.bf16.msra.mxu0 0
        %578 = vmatpush.bf16.msra.mxu0 0
        %579 = vmatpush.bf16.msra.mxu0 %v551
        %580 = vmatmul.bf16.gmra.mxu0 %v557
        %v581 = vpop.f32.mrf.mxu0
        %v582 = vadd.f32 0.0, %v581
        %v583 = vpop.f32.mrf.mxu0
        %584 = vdwg.mxu0
        %585 = vmatpush.bf16.msra.mxu0 0
        %586 = vmatpush.bf16.msra.mxu0 0
        %587 = vmatpush.bf16.msra.mxu0 0
        %588 = vmatpush.bf16.msra.mxu0 0
        %589 = vmatpush.bf16.msra.mxu0 0
        %590 = vmatpush.bf16.msra.mxu0 0
        %591 = vmatpush.bf16.msra.mxu0 0
        %592 = vmatpush.bf16.msra.mxu0 %v552
        %593 = vmatmul.bf16.gmra.mxu0 %v557
        %v594 = vpop.f32.mrf.mxu0
        %v595 = vadd.f32 0.0, %v594
        %v596 = vpop.f32.mrf.mxu0
        %597 = vdwg.mxu0
        %v598 = vadd.f32 %v536, %v569
        %v599 = vadd.f32 %v537, %v582
        %v600 = vadd.f32 %v538, %v595
        %s601 = scalar_lea.vmem [#allocation5], 24
        %v602 = vld [vmem:[%s601] sm:$0xf]
        %603 = vrot.lane.b32.xlu0 %v233, 92
        %v604 = vpop.permute.xlu0 %603
        %605 = vrot.lane.b32.xlu0 %v234, 92
        %v606 = vpop.permute.xlu0 %605
        %607 = vrot.lane.b32.xlu0 %v235, 92
        %v608 = vpop.permute.xlu0 %607
        %609 = vrot.lane.b32.xlu0 %v236, 92
        %v610 = vpop.permute.xlu0 %609
        %vm611 = vcmask 752640
        %v612 = vsel %vm611, %v604, %v606
        %v613 = vsel %vm611, %v606, %v608
        %v614 = vsel %vm611, %v608, %v610
        %v619 = vsel %vm252, %v602, 0
        %621 = vmatpush.bf16.msra.mxu0 0
        %622 = vmatpush.bf16.msra.mxu0 0
        %623 = vmatpush.bf16.msra.mxu0 0
        %624 = vmatpush.bf16.msra.mxu0 0
        %625 = vmatpush.bf16.msra.mxu0 0
        %626 = vmatpush.bf16.msra.mxu0 0
        %627 = vmatpush.bf16.msra.mxu0 0
        %628 = vmatpush.bf16.msra.mxu0 %v612
        %629 = vmatmul.bf16.gmra.mxu0 %v619
        %v630 = vpop.f32.mrf.mxu0
        %v631 = vadd.f32 0.0, %v630
        %v632 = vpop.f32.mrf.mxu0
        %633 = vdwg.mxu0
        %634 = vmatpush.bf16.msra.mxu0 0
        %635 = vmatpush.bf16.msra.mxu0 0
        %636 = vmatpush.bf16.msra.mxu0 0
        %637 = vmatpush.bf16.msra.mxu0 0
        %638 = vmatpush.bf16.msra.mxu0 0
        %639 = vmatpush.bf16.msra.mxu0 0
        %640 = vmatpush.bf16.msra.mxu0 0
        %641 = vmatpush.bf16.msra.mxu0 %v613
        %642 = vmatmul.bf16.gmra.mxu0 %v619
        %v643 = vpop.f32.mrf.mxu0
        %v644 = vadd.f32 0.0, %v643
        %v645 = vpop.f32.mrf.mxu0
        %646 = vdwg.mxu0
        %647 = vmatpush.bf16.msra.mxu0 0
        %648 = vmatpush.bf16.msra.mxu0 0
        %649 = vmatpush.bf16.msra.mxu0 0
        %650 = vmatpush.bf16.msra.mxu0 0
        %651 = vmatpush.bf16.msra.mxu0 0
        %652 = vmatpush.bf16.msra.mxu0 0
        %653 = vmatpush.bf16.msra.mxu0 0
        %654 = vmatpush.bf16.msra.mxu0 %v614
        %655 = vmatmul.bf16.gmra.mxu0 %v619
        %v656 = vpop.f32.mrf.mxu0
        %v657 = vadd.f32 0.0, %v656
        %v658 = vpop.f32.mrf.mxu0
        %659 = vdwg.mxu0
        %v660 = vadd.f32 %v598, %v631
        %v661 = vadd.f32 %v599, %v644
        %v662 = vadd.f32 %v600, %v657
        %s663 = scalar_lea.vmem [#allocation5], 28
        %v664 = vld [vmem:[%s663] sm:$0xf]
        %665 = vrot.lane.b32.xlu0 %v233, 91
        %v666 = vpop.permute.xlu0 %665
        %667 = vrot.lane.b32.xlu0 %v234, 91
        %v668 = vpop.permute.xlu0 %667
        %669 = vrot.lane.b32.xlu0 %v235, 91
        %v670 = vpop.permute.xlu0 %669
        %671 = vrot.lane.b32.xlu0 %v236, 91
        %v672 = vpop.permute.xlu0 %671
        %vm673 = vcmask 744448
        %v674 = vsel %vm673, %v666, %v668
        %v675 = vsel %vm673, %v668, %v670
        %v676 = vsel %vm673, %v670, %v672
        %v681 = vsel %vm252, %v664, 0
        %683 = vmatpush.bf16.msra.mxu0 0
        %684 = vmatpush.bf16.msra.mxu0 0
        %685 = vmatpush.bf16.msra.mxu0 0
        %686 = vmatpush.bf16.msra.mxu0 0
        %687 = vmatpush.bf16.msra.mxu0 0
        %688 = vmatpush.bf16.msra.mxu0 0
        %689 = vmatpush.bf16.msra.mxu0 0
        %690 = vmatpush.bf16.msra.mxu0 %v674
        %691 = vmatmul.bf16.gmra.mxu0 %v681
        %v692 = vpop.f32.mrf.mxu0
        %v693 = vadd.f32 0.0, %v692
        %v694 = vpop.f32.mrf.mxu0
        %695 = vdwg.mxu0
        %696 = vmatpush.bf16.msra.mxu0 0
        %697 = vmatpush.bf16.msra.mxu0 0
        %698 = vmatpush.bf16.msra.mxu0 0
        %699 = vmatpush.bf16.msra.mxu0 0
        %700 = vmatpush.bf16.msra.mxu0 0
        %701 = vmatpush.bf16.msra.mxu0 0
        %702 = vmatpush.bf16.msra.mxu0 0
        %703 = vmatpush.bf16.msra.mxu0 %v675
        %704 = vmatmul.bf16.gmra.mxu0 %v681
        %v705 = vpop.f32.mrf.mxu0
        %v706 = vadd.f32 0.0, %v705
        %v707 = vpop.f32.mrf.mxu0
        %708 = vdwg.mxu0
        %709 = vmatpush.bf16.msra.mxu0 0
        %710 = vmatpush.bf16.msra.mxu0 0
        %711 = vmatpush.bf16.msra.mxu0 0
        %712 = vmatpush.bf16.msra.mxu0 0
        %713 = vmatpush.bf16.msra.mxu0 0
        %714 = vmatpush.bf16.msra.mxu0 0
        %715 = vmatpush.bf16.msra.mxu0 0
        %716 = vmatpush.bf16.msra.mxu0 %v676
        %717 = vmatmul.bf16.gmra.mxu0 %v681
        %v718 = vpop.f32.mrf.mxu0
        %v719 = vadd.f32 0.0, %v718
        %v720 = vpop.f32.mrf.mxu0
        %721 = vdwg.mxu0
        %v722 = vadd.f32 %v660, %v693
        %v723 = vadd.f32 %v661, %v706
        %v724 = vadd.f32 %v662, %v719
        %s725 = scalar_lea.vmem [#allocation5], 32
        %v726 = vld [vmem:[%s725] sm:$0xf]
        %727 = vrot.lane.b32.xlu0 %v233, 90
        %v728 = vpop.permute.xlu0 %727
        %729 = vrot.lane.b32.xlu0 %v234, 90
        %v730 = vpop.permute.xlu0 %729
        %731 = vrot.lane.b32.xlu0 %v235, 90
        %v732 = vpop.permute.xlu0 %731
        %733 = vrot.lane.b32.xlu0 %v236, 90
        %v734 = vpop.permute.xlu0 %733
        %vm735 = vcmask 736256
        %v736 = vsel %vm735, %v728, %v730
        %v737 = vsel %vm735, %v730, %v732
        %v738 = vsel %vm735, %v732, %v734
        %v743 = vsel %vm252, %v726, 0
        %745 = vmatpush.bf16.msra.mxu0 0
        %746 = vmatpush.bf16.msra.mxu0 0
        %747 = vmatpush.bf16.msra.mxu0 0
        %748 = vmatpush.bf16.msra.mxu0 0
        %749 = vmatpush.bf16.msra.mxu0 0
        %750 = vmatpush.bf16.msra.mxu0 0
        %751 = vmatpush.bf16.msra.mxu0 0
        %752 = vmatpush.bf16.msra.mxu0 %v736
        %753 = vmatmul.bf16.gmra.mxu0 %v743
        %v754 = vpop.f32.mrf.mxu0
        %v755 = vadd.f32 0.0, %v754
        %v756 = vpop.f32.mrf.mxu0
        %757 = vdwg.mxu0
        %758 = vmatpush.bf16.msra.mxu0 0
        %759 = vmatpush.bf16.msra.mxu0 0
        %760 = vmatpush.bf16.msra.mxu0 0
        %761 = vmatpush.bf16.msra.mxu0 0
        %762 = vmatpush.bf16.msra.mxu0 0
        %763 = vmatpush.bf16.msra.mxu0 0
        %764 = vmatpush.bf16.msra.mxu0 0
        %765 = vmatpush.bf16.msra.mxu0 %v737
        %766 = vmatmul.bf16.gmra.mxu0 %v743
        %v767 = vpop.f32.mrf.mxu0
        %v768 = vadd.f32 0.0, %v767
        %v769 = vpop.f32.mrf.mxu0
        %770 = vdwg.mxu0
        %771 = vmatpush.bf16.msra.mxu0 0
        %772 = vmatpush.bf16.msra.mxu0 0
        %773 = vmatpush.bf16.msra.mxu0 0
        %774 = vmatpush.bf16.msra.mxu0 0
        %775 = vmatpush.bf16.msra.mxu0 0
        %776 = vmatpush.bf16.msra.mxu0 0
        %777 = vmatpush.bf16.msra.mxu0 0
        %778 = vmatpush.bf16.msra.mxu0 %v738
        %779 = vmatmul.bf16.gmra.mxu0 %v743
        %v780 = vpop.f32.mrf.mxu0
        %v781 = vadd.f32 0.0, %v780
        %v782 = vpop.f32.mrf.mxu0
        %783 = vdwg.mxu0
        %v784 = vadd.f32 %v722, %v755
        %v785 = vadd.f32 %v723, %v768
        %v786 = vadd.f32 %v724, %v781
        %788 = vset.pattern.permute.xlu0 0
        %789 = vperm.xlu0 %788, %v209
        %v790 = vpop.permute.xlu0 %789
        %v792 = vadd.f32 %v784, %v790
        %v793 = vadd.f32 %v785, %v790
        %v794 = vadd.f32 %v786, %v790
        %795 = vst [vmem:[%s207] sm:$0xff] %v792
        %796 = vst [vmem:[%s207 + $0x8] sm:$0xff] %v793
        %797 = vst [vmem:[%s207 + $0x10] sm:$0xff] %v794
        %s798 = sand.u32 %s97, 1
        %s799 = scalar_lea.sflag [#allocation4], %s798
        %s800 = sand.u32 %s97, 1
        %s801 = smul.addr %s800, 24
        %s802 = scalar_lea.vmem [#allocation7], %s801
        // Predicated region
        $region41: #{tpu_custom_call.1} parent=31 // pred_check
          %p803 = pneg %p107
        $region42: #{tpu_custom_call.1} parent=31 // pred_check_branch
          %805 = sbr.rel (%p803) target = $region44
        $region43: #{tpu_custom_call.1} parent=31 // pred_region
          %807 = vsyncadd %s799, 0
          %s808 = smul.addr %s21, 3
          %s809 = smul.addr %s808, 8
          %s810 = scalar_lea.hbm %s3, %s809
          %s812 = sshll.u32 %s802, 4
          %s813 = int_to_ptr.vmem [resolvable:$true] %s812
          %s814 = sshll.u32 %s810, 4
          %s815 = int_to_ptr.hbm [resolvable:$true] %s814
          %817 = dma.vmem_to_hbm [thread:$0]  %s813, 384, %s815, %s799
        $region44: #{tpu_custom_call.1} parent=31 // pred_fallthru
          _
      $region32: #{tpu_custom_call.1} parent=5 // pred_fallthru
        _
      %p818 = scmp.le.s32.totalorder 2, %s16
      // Predicated region
      $region45: #{tpu_custom_call.1} parent=5 // pred_check
        %p819 = pneg %p818
      $region46: #{tpu_custom_call.1} parent=5 // pred_check_branch
        %821 = sbr.rel (%p819) target = $region48
      $region47: #{tpu_custom_call.1} parent=5 // pred_region
        %s822 = ssub.s32 %s16, 2
        // Predicated region
        $region49: #{tpu_custom_call.1} parent=47 // pred_check
          %p823 = pneg %p113
        $region50: #{tpu_custom_call.1} parent=47 // pred_check_branch
          %825 = sbr.rel (%p823) target = $region52
        $region51: #{tpu_custom_call.1} parent=47 // pred_region
          %s826 = sand.u32 %s98, 1
          %s827 = scalar_lea.sflag [#allocation4], %s826
          %s828 = sand.u32 %s98, 1
          %s829 = smul.addr %s828, 24
          %s830 = scalar_lea.vmem [#allocation7], %s829
          %832 = dma.done %s827, 384
        $region52: #{tpu_custom_call.1} parent=47 // pred_fallthru
          _
      $region48: #{tpu_custom_call.1} parent=5 // pred_fallthru
        _
    $region6: #{tpu_custom_call.1} parent=1 // loop_footer
      %s20 = sadd.s32 1, %s16
    $region7: #{tpu_custom_call.1} parent=1 // loop_footer_branch
      %15 = sbr.rel target = $region3
    $region8: #{tpu_custom_call.1} parent=1 // loop_exit
      _
    %833 = vsyncpa [#allocation3], 1
    %s834 = scalar_lea.sflag [#allocation3], 1
    %835 = vsyncpa %s834, 1
    %836 = vsyncpa [#allocation6], 1
    %837 = vsyncpa [#allocation4], 1
    %s838 = scalar_lea.sflag [#allocation4], 1
    %839 = vsyncpa %s838, 1

</llo_original>
